<compile_context>
chip_gen: v7x
topology: tpu7x:2x2x1
jax: 0.10.0
libtpu: 0.0.40
codegen_flags: <defaults>
</compile_context>

<pallas_src>
import jax
import jax.numpy as jnp
from jax.experimental import pallas as pl
from jax.experimental.pallas import tpu as pltpu


_LANE = 128                      # lane width: keep hidden dim lane-dense
_DESIRED_ROWS = 256              # target rows gathered per grid step
_RESIDENT_TABLE_BYTES = 2 << 20  # tables <= 2 MiB stay resident in VMEM


def _round_up(x, m):
    return ((x + m - 1) // m) * m


def _make_gather_kernel(rows_per_step, resident):
    """Build the per-grid-step gather kernel.

    labels_ref : SMEM (b_pad,) int32, scalar-prefetched
    table_ref  : resident -> (V, H_pad) VMEM block (fetched once per core)
                 else     -> (V, H_pad) ref left in HBM (memory_space=pl.ANY)
    out_ref    : (rows_per_step, H_pad) VMEM output block
    sem        : single shared DMA semaphore (non-resident path only)
    """
    if resident:
        def kernel(labels_ref, table_ref, out_ref):
            base = pl.program_id(0) * rows_per_step
            for r in range(rows_per_step):            # static unroll
                lbl = labels_ref[base + r]
                # In-VMEM dynamic-slice gather straight into the output block.
                out_ref[pl.ds(r, 1), :] = table_ref[pl.ds(lbl, 1), :]
        return kernel

    def kernel(labels_ref, table_hbm, out_ref, sem):
        base = pl.program_id(0) * rows_per_step
        copies = []
        for r in range(rows_per_step):                # static unroll
            lbl = labels_ref[base + r]
            cp = pltpu.make_async_copy(
                table_hbm.at[pl.ds(lbl, 1), :],       # one (1, H_pad) HBM row
                out_ref.at[pl.ds(r, 1), :],           # straight into the output block
                sem,                                  # shared semaphore
            )
            cp.start()
            copies.append(cp)
        # All waits stay inside the kernel body so the pipeline's output
        # writeback DMA cannot race the row gathers.
        for cp in copies:
            cp.wait()
    return kernel


def label_embedder_forward(labels, embedding_table, *,
                           desired_rows_per_step=_DESIRED_ROWS,
                           resident_table_bytes=_RESIDENT_TABLE_BYTES):
    """embeddings = embedding_table[labels].  labels: any int shape -> (..., H)."""
    lbl_shape = labels.shape
    labels_flat = labels.reshape(-1)
    B = labels_flat.shape[0]
    V, H = embedding_table.shape
    dtype = embedding_table.dtype
    itemsize = jnp.dtype(dtype).itemsize

    # Lane-dense hidden dim: pad H up to a multiple of 128 (full vst, >=512 B rows).
    H_pad = _round_up(H, _LANE)
    table = embedding_table
    if H_pad != H:
        table = jnp.pad(table, ((0, 0), (0, H_pad - H)))

    # Row-group size: multiple of the dtype's sublane tile, clamped to the batch.
    sub = max(8, 32 // max(1, itemsize))              # f32:8, bf16:16, int8:32
    rows = min(_round_up(desired_rows_per_step, sub), _round_up(B, sub))
    b_pad = _round_up(B, rows)

    # PyTorch nn.Embedding raises on out-of-range labels; here we clamp so the
    # gather address can never go out of bounds (documented behavioral delta).
    labels_i32 = jnp.clip(labels_flat.astype(jnp.int32), 0, V - 1)
    if b_pad != B:
        labels_i32 = jnp.pad(labels_i32, (0, b_pad - B))  # padded rows gather row 0

    resident = (V * H_pad * itemsize) <= resident_table_bytes

    if resident:
        # Constant block index -> Pallas fetches the full table once per core
        # and keeps it resident in VMEM across all grid steps.
        table_spec = pl.BlockSpec((V, H_pad), lambda i, labels: (0, 0))
        scratch_shapes = []
    else:
        table_spec = pl.BlockSpec(memory_space=pl.ANY)    # table stays in HBM
        scratch_shapes = [pltpu.SemaphoreType.DMA(())]    # one shared DMA sem

    out = pl.pallas_call(
        _make_gather_kernel(rows, resident),
        out_shape=jax.ShapeDtypeStruct((b_pad, H_pad), dtype),
        grid_spec=pltpu.PrefetchScalarGridSpec(
            num_scalar_prefetch=1,                        # labels -> SMEM
            grid=(b_pad // rows,),
            in_specs=[table_spec],
            out_specs=pl.BlockSpec((rows, H_pad), lambda i, labels: (i, 0)),
            scratch_shapes=scratch_shapes,
        ),
        compiler_params=pltpu.CompilerParams(
            dimension_semantics=("parallel",)),           # shard row-groups on v7x
    )(labels_i32, table)

    out = out[:B, :H]
    return out.reshape(*lbl_shape, H)


if __name__ == "__main__":
    # Module config (small, consistent with LabelEmbedder.__init__).
    num_classes = 15
    hidden_size = 32
    batch = 8

    key = jax.random.PRNGKey(0)
    k_tab, k_lbl = jax.random.split(key)

    # nn.Embedding(num_classes + 1, hidden_size), weights ~ N(0, 0.02)
    V = num_classes + 1
    embedding_table = 0.02 * jax.random.normal(
        k_tab, (V, hidden_size), dtype=jnp.float32)

    # Labels in [0, num_classes] (the extra row is the CFG "null" class).
    labels = jax.random.randint(k_lbl, (batch,), 0, V, dtype=jnp.int32)

    # Reference: plain gather.
    ref = jnp.take(embedding_table, labels, axis=0)

    # Small table -> resident-in-VMEM fast path.
    out = jax.block_until_ready(label_embedder_forward(labels, embedding_table))
    assert out.shape == (batch, hidden_size)
    assert jnp.allclose(out, ref, atol=0.0), "mismatch (resident path)"

    # Also exercise the large-table HBM scalar-prefetch DMA-gather path.
    out2 = jax.block_until_ready(
        label_embedder_forward(labels, embedding_table, resident_table_bytes=0))
    assert jnp.allclose(out2, ref, atol=0.0), "mismatch (HBM gather path)"

    print("KERNEL_OK")
</pallas_src>

<mosaic_0001>
module attributes {stable_mosaic.version = 11 : i64} {
  func.func @kernel(%arg0: i32, %arg1: memref<8xi32, #tpu.memory_space<smem>>, %arg2: memref<16x128xf32, #tpu.memory_space<vmem>>, %arg3: memref<8x128xf32, #tpu.memory_space<vmem>>) attributes {dimension_semantics = [#tpu.dimension_semantics<parallel>], iteration_bounds = array<i64: 1>, scalar_prefetch = 1 : i64, scratch_operands = 0 : i64, tpu.core_type = #tpu.core_type<tc>, window_params = [{pipeline_mode = #tpu.pipeline_mode<synchronous>, transform_indices = @transform_0, window_bounds = array<i64: 16, 128>}, {transform_indices = @transform_1, window_bounds = array<i64: 8, 128>}]} {
    %c8_i32 = arith.constant 8 : i32
    %0 = arith.muli %arg0, %c8_i32 : i32
    %c0_i32 = arith.constant 0 : i32
    %1 = arith.addi %0, %c0_i32 : i32
    %2 = arith.index_cast %1 : i32 to index
    %3 = memref.load %arg1[%2] : memref<8xi32, #tpu.memory_space<smem>>
    %4 = arith.index_cast %3 : i32 to index
    %c0 = arith.constant 0 : index
    %5 = vector.load %arg2[%4, %c0] : memref<16x128xf32, #tpu.memory_space<vmem>>, vector<1x128xf32>
    %c0_0 = arith.constant 0 : index
    %c0_1 = arith.constant 0 : index
    %6 = vector.load %arg3[%c0_0, %c0_1] : memref<8x128xf32, #tpu.memory_space<vmem>>, vector<1x128xf32>
    tpu.vector_store %arg3[%c0_0, %c0_1], %5 {strides = array<i32>} : memref<8x128xf32, #tpu.memory_space<vmem>>, vector<1x128xf32>,
    %c1_i32 = arith.constant 1 : i32
    %7 = arith.addi %0, %c1_i32 : i32
    %8 = arith.index_cast %7 : i32 to index
    %9 = memref.load %arg1[%8] : memref<8xi32, #tpu.memory_space<smem>>
    %10 = arith.index_cast %9 : i32 to index
    %c0_2 = arith.constant 0 : index
    %11 = vector.load %arg2[%10, %c0_2] : memref<16x128xf32, #tpu.memory_space<vmem>>, vector<1x128xf32>
    %c1 = arith.constant 1 : index
    %c0_3 = arith.constant 0 : index
    %12 = vector.load %arg3[%c1, %c0_3] : memref<8x128xf32, #tpu.memory_space<vmem>>, vector<1x128xf32>
    tpu.vector_store %arg3[%c1, %c0_3], %11 {strides = array<i32>} : memref<8x128xf32, #tpu.memory_space<vmem>>, vector<1x128xf32>,
    %c2_i32 = arith.constant 2 : i32
    %13 = arith.addi %0, %c2_i32 : i32
    %14 = arith.index_cast %13 : i32 to index
    %15 = memref.load %arg1[%14] : memref<8xi32, #tpu.memory_space<smem>>
    %16 = arith.index_cast %15 : i32 to index
    %c0_4 = arith.constant 0 : index
    %17 = vector.load %arg2[%16, %c0_4] : memref<16x128xf32, #tpu.memory_space<vmem>>, vector<1x128xf32>
    %c2 = arith.constant 2 : index
    %c0_5 = arith.constant 0 : index
    %18 = vector.load %arg3[%c2, %c0_5] : memref<8x128xf32, #tpu.memory_space<vmem>>, vector<1x128xf32>
    tpu.vector_store %arg3[%c2, %c0_5], %17 {strides = array<i32>} : memref<8x128xf32, #tpu.memory_space<vmem>>, vector<1x128xf32>,
    %c3_i32 = arith.constant 3 : i32
    %19 = arith.addi %0, %c3_i32 : i32
    %20 = arith.index_cast %19 : i32 to index
    %21 = memref.load %arg1[%20] : memref<8xi32, #tpu.memory_space<smem>>
    %22 = arith.index_cast %21 : i32 to index
    %c0_6 = arith.constant 0 : index
    %23 = vector.load %arg2[%22, %c0_6] : memref<16x128xf32, #tpu.memory_space<vmem>>, vector<1x128xf32>
    %c3 = arith.constant 3 : index
    %c0_7 = arith.constant 0 : index
    %24 = vector.load %arg3[%c3, %c0_7] : memref<8x128xf32, #tpu.memory_space<vmem>>, vector<1x128xf32>
    tpu.vector_store %arg3[%c3, %c0_7], %23 {strides = array<i32>} : memref<8x128xf32, #tpu.memory_space<vmem>>, vector<1x128xf32>,
    %c4_i32 = arith.constant 4 : i32
    %25 = arith.addi %0, %c4_i32 : i32
    %26 = arith.index_cast %25 : i32 to index
    %27 = memref.load %arg1[%26] : memref<8xi32, #tpu.memory_space<smem>>
    %28 = arith.index_cast %27 : i32 to index
    %c0_8 = arith.constant 0 : index
    %29 = vector.load %arg2[%28, %c0_8] : memref<16x128xf32, #tpu.memory_space<vmem>>, vector<1x128xf32>
    %c4 = arith.constant 4 : index
    %c0_9 = arith.constant 0 : index
    %30 = vector.load %arg3[%c4, %c0_9] : memref<8x128xf32, #tpu.memory_space<vmem>>, vector<1x128xf32>
    tpu.vector_store %arg3[%c4, %c0_9], %29 {strides = array<i32>} : memref<8x128xf32, #tpu.memory_space<vmem>>, vector<1x128xf32>,
    %c5_i32 = arith.constant 5 : i32
    %31 = arith.addi %0, %c5_i32 : i32
    %32 = arith.index_cast %31 : i32 to index
    %33 = memref.load %arg1[%32] : memref<8xi32, #tpu.memory_space<smem>>
    %34 = arith.index_cast %33 : i32 to index
    %c0_10 = arith.constant 0 : index
    %35 = vector.load %arg2[%34, %c0_10] : memref<16x128xf32, #tpu.memory_space<vmem>>, vector<1x128xf32>
    %c5 = arith.constant 5 : index
    %c0_11 = arith.constant 0 : index
    %36 = vector.load %arg3[%c5, %c0_11] : memref<8x128xf32, #tpu.memory_space<vmem>>, vector<1x128xf32>
    tpu.vector_store %arg3[%c5, %c0_11], %35 {strides = array<i32>} : memref<8x128xf32, #tpu.memory_space<vmem>>, vector<1x128xf32>,
    %c6_i32 = arith.constant 6 : i32
    %37 = arith.addi %0, %c6_i32 : i32
    %38 = arith.index_cast %37 : i32 to index
    %39 = memref.load %arg1[%38] : memref<8xi32, #tpu.memory_space<smem>>
    %40 = arith.index_cast %39 : i32 to index
    %c0_12 = arith.constant 0 : index
    %41 = vector.load %arg2[%40, %c0_12] : memref<16x128xf32, #tpu.memory_space<vmem>>, vector<1x128xf32>
    %c6 = arith.constant 6 : index
    %c0_13 = arith.constant 0 : index
    %42 = vector.load %arg3[%c6, %c0_13] : memref<8x128xf32, #tpu.memory_space<vmem>>, vector<1x128xf32>
    tpu.vector_store %arg3[%c6, %c0_13], %41 {strides = array<i32>} : memref<8x128xf32, #tpu.memory_space<vmem>>, vector<1x128xf32>,
    %c7_i32 = arith.constant 7 : i32
    %43 = arith.addi %0, %c7_i32 : i32
    %44 = arith.index_cast %43 : i32 to index
    %45 = memref.load %arg1[%44] : memref<8xi32, #tpu.memory_space<smem>>
    %46 = arith.index_cast %45 : i32 to index
    %c0_14 = arith.constant 0 : index
    %47 = vector.load %arg2[%46, %c0_14] : memref<16x128xf32, #tpu.memory_space<vmem>>, vector<1x128xf32>
    %c7 = arith.constant 7 : index
    %c0_15 = arith.constant 0 : index
    %48 = vector.load %arg3[%c7, %c0_15] : memref<8x128xf32, #tpu.memory_space<vmem>>, vector<1x128xf32>
    tpu.vector_store %arg3[%c7, %c0_15], %47 {strides = array<i32>} : memref<8x128xf32, #tpu.memory_space<vmem>>, vector<1x128xf32>,
    return
  }
  func.func @transform_0(%arg0: i32, %arg1: memref<8xi32, #tpu.memory_space<smem>>) -> (i32, i32) {
    %c0_i32 = arith.constant 0 : i32
    %c0_i32_0 = arith.constant 0 : i32
    %c0_i32_1 = arith.constant 0 : i32
    return %c0_i32, %c0_i32_0 : i32, i32
  }
  func.func @transform_1(%arg0: i32, %arg1: memref<8xi32, #tpu.memory_space<smem>>) -> (i32, i32) {
    %c0_i32 = arith.constant 0 : i32
    %c0_i32_0 = arith.constant 0 : i32
    return %arg0, %c0_i32 : i32, i32
  }
}

</mosaic_0001>

<llo_original>
// kernel: tpu_custom_call.1
$region0: #{tpu_custom_call.1}
  #allocation0 [shape = 'u32[]', space=smem, size = 0x4, offset = 0x4, fixed_abs, tag = 'smem constant byte address 0x4 - core index']
  #allocation1 [shape = 'u32[144,128]{1,0:T(1,128)}', space=vmem, size = 0x12000, scoped, tag = 'internal scratch']
  #allocation2 [shape = 's32[1]{0}', space=sflag, size = 0x4, scoped, tag = 'scoped memory for tpu_custom_call.1']
  #allocation3 [shape = 'u8[512]{0}', space=smem, size = 0x200, scoped, tag = 'prefetched SMEM operand 0']
  %s0 = inlined_call_operand.hbm [shape: s32[8], index: 0, kind: input, shape index: {}]
  %s1 = inlined_call_operand.hbm [shape: f32[16,128], index: 1, kind: input, shape index: {}]
  %s2 = inlined_call_operand.hbm [shape: f32[8,128], index: 2, kind: output, shape index: {}]
  %s3 = sld [smem:[#allocation0]]
  $region18: #{tpu_custom_call.1} parent=0
    _
  %s5 = ssub.s32 1, %s3
  %s6 = scalar_select 0, %s5, %s3
  %8 = dma.hbm_to_smem %s0, 16, [#allocation3], [#allocation2]
  %9 = dma.done [#allocation2], 16
  %10 = sfence
  $region1: #{tpu_custom_call.1} parent=0
    #allocation4 [shape = 'u8[8192]{0}', space=vmem, size = 0x2000, scoped, tag = 'input window, operand 1, single buffered']
    #allocation5 [shape = 's32[1]{0}', space=sflag, size = 0x4, scoped, tag = 'scoped memory for tpu_custom_call.1']
    #allocation6 [shape = 's32[1]{0}', space=sflag, size = 0x4, scoped, tag = 'scoped memory for tpu_custom_call.1']
    #allocation7 [shape = 'u8[4096]{0}', space=vmem, size = 0x1000, scoped, tag = 'output window, operand 0, single buffered']
    %11 = vsyncpa [#allocation5], 0
    %12 = vsyncpa [#allocation6], 0
    // Predicated region
    $region2: #{tpu_custom_call.1} parent=1 // pred_check
      _
    $region3: #{tpu_custom_call.1} parent=1 // pred_check_branch
      %14 = sbr.rel (0) target = $region5
    $region4: #{tpu_custom_call.1} parent=1 // pred_region
      %s16 = ssub.s32 256, 256
      %17 = vsyncadd [#allocation5], %s16
      %s18 = sshll.u32 [#allocation4], 4
      %s19 = int_to_ptr.vmem [resolvable:$true] %s18
      %24 = dma.hbm_to_vmem [thread:$0]  %s1, 256, %s19, [#allocation5], 128, 128, 8
    $region5: #{tpu_custom_call.1} parent=1 // pred_fallthru
      _
    // Predicated region
    $region6: #{tpu_custom_call.1} parent=1 // pred_check
      _
    $region7: #{tpu_custom_call.1} parent=1 // pred_check_branch
      %26 = sbr.rel (0) target = $region9
    $region8: #{tpu_custom_call.1} parent=1 // pred_region
      %27 = dma.done [#allocation5], 256
    $region9: #{tpu_custom_call.1} parent=1 // pred_fallthru
      _
    %s28 = smul.u32 0, 8
    %s29 = sld [smem:[#allocation3 + %s28]]
    %s30 = scalar_lea.vmem [#allocation4], %s29
    %v31 = vld [vmem:[%s30] sm:$0x1]
    %32 = vst [vmem:[#allocation7] sm:$0x1] %v31
    %s33 = sadd.s32 %s28, 1
    %s34 = sld [smem:[#allocation3 + %s33]]
    %s35 = scalar_lea.vmem [#allocation4], %s34
    %v36 = vld [vmem:[%s35] sm:$0x1]
    %37 = vst [vmem:[#allocation7 + $0x1] sm:$0x1] %v36
    %s38 = sadd.s32 %s28, 2
    %s39 = sld [smem:[#allocation3 + %s38]]
    %s40 = scalar_lea.vmem [#allocation4], %s39
    %v41 = vld [vmem:[%s40] sm:$0x1]
    %42 = vst [vmem:[#allocation7 + $0x2] sm:$0x1] %v41
    %s43 = sadd.s32 %s28, 3
    %s44 = sld [smem:[#allocation3 + %s43]]
    %s45 = scalar_lea.vmem [#allocation4], %s44
    %v46 = vld [vmem:[%s45] sm:$0x1]
    %47 = vst [vmem:[#allocation7 + $0x3] sm:$0x1] %v46
    %s48 = sadd.s32 %s28, 4
    %s49 = sld [smem:[#allocation3 + %s48]]
    %s50 = scalar_lea.vmem [#allocation4], %s49
    %v51 = vld [vmem:[%s50] sm:$0x1]
    %52 = vst [vmem:[#allocation7 + $0x4] sm:$0x1] %v51
    %s53 = sadd.s32 %s28, 5
    %s54 = sld [smem:[#allocation3 + %s53]]
    %s55 = scalar_lea.vmem [#allocation4], %s54
    %v56 = vld [vmem:[%s55] sm:$0x1]
    %57 = vst [vmem:[#allocation7 + $0x5] sm:$0x1] %v56
    %s58 = sadd.s32 %s28, 6
    %s59 = sld [smem:[#allocation3 + %s58]]
    %s60 = scalar_lea.vmem [#allocation4], %s59
    %v61 = vld [vmem:[%s60] sm:$0x1]
    %62 = vst [vmem:[#allocation7 + $0x6] sm:$0x1] %v61
    %s63 = sadd.s32 %s28, 7
    %s64 = sld [smem:[#allocation3 + %s63]]
    %s65 = scalar_lea.vmem [#allocation4], %s64
    %v66 = vld [vmem:[%s65] sm:$0x1]
    %67 = vst [vmem:[#allocation7 + $0x7] sm:$0x1] %v66
    // Predicated region
    $region10: #{tpu_custom_call.1} parent=1 // pred_check
      _
    $region11: #{tpu_custom_call.1} parent=1 // pred_check_branch
      %69 = sbr.rel (0) target = $region13
    $region12: #{tpu_custom_call.1} parent=1 // pred_region
      %s71 = ssub.s32 128, 128
      %72 = vsyncadd [#allocation6], %s71
      %s74 = sshll.u32 [#allocation7], 4
      %s75 = int_to_ptr.vmem [resolvable:$true] %s74
      %77 = dma.vmem_to_hbm [thread:$0]  %s75, 128, %s2, [#allocation6]
    $region13: #{tpu_custom_call.1} parent=1 // pred_fallthru
      _
    // Predicated region
    $region14: #{tpu_custom_call.1} parent=1 // pred_check
      _
    $region15: #{tpu_custom_call.1} parent=1 // pred_check_branch
      %79 = sbr.rel (0) target = $region17
    $region16: #{tpu_custom_call.1} parent=1 // pred_region
      %80 = dma.done [#allocation6], 128
    $region17: #{tpu_custom_call.1} parent=1 // pred_fallthru
      _
    %81 = vsyncpa [#allocation5], 1
    %82 = vsyncpa [#allocation6], 1

</llo_original>
